<compile_context>
chip_gen: v5e
topology: v5e:2x2
jax: 0.10.0
libtpu: 0.0.40
codegen_flags: <defaults>
</compile_context>

<pallas_src>
import jax
import jax.numpy as jnp
from jax.experimental import pallas as pl
from jax.experimental.pallas import tpu as pltpu


def _round_up(x, m):
    return ((x + m - 1) // m) * m


def _vmem_budget_bytes():
    """Per-core VMEM budget: ~75% of physical capacity (headroom for compiler
    internal scratch).  v7x: ~48 MiB, v5e/v6e: ~96 MiB.  Conservative fallback
    if the query is unavailable (e.g. interpret mode)."""
    try:
        cap = int(pltpu.get_tpu_info().vmem_capacity_bytes)
    except Exception:
        cap = 64 << 20
    return (cap * 3) // 4


def _choose_tile_rows(n_rows, f, c_pad, x_bytes, out_bytes, w_bytes, budget_bytes):
    """Largest row tile whose double-buffered x/out tiles fit next to the
    VMEM-resident weight + bias.  Weight is budgeted at 2 buffers so the
    no-Buffered(1) fallback path also fits.  Multiples of 256 preferred (whole
    MXU M passes on v6e/v7x), 16 minimum (bf16 sublane packing)."""
    resident = 2 * (f * c_pad * w_bytes + c_pad * 4)          # weight + f32 bias
    avail = max(budget_bytes - resident, 1 << 20)
    per_row = 2 * (f * x_bytes + c_pad * out_bytes)           # double-buffered x + out
    t = max(16, min(1024, avail // per_row))
    t = min(t, _round_up(n_rows, 16))
    if t >= 256:
        t = (t // 256) * 256
    else:
        t = max(16, (t // 16) * 16)
    return int(t)


def _decoder_kernel(x_ref, w_ref, b_ref, o_ref):
    # x: (TILE_ROWS, F) native dtype, w: (F, C_pad) compute dtype, b: (1, C_pad) f32
    # o: (TILE_ROWS, C_pad) = log_softmax(x @ w + b, axis=-1)
    x = x_ref[...].astype(w_ref.dtype)                # in-kernel cast (VPU, hidden)
    logits = jnp.dot(x, w_ref[...], preferred_element_type=jnp.float32)
    logits = logits + b_ref[...]                      # (1, C_pad) broadcast over rows
    m = jnp.max(logits, axis=-1, keepdims=True)       # XLU lane reduction
    shifted = logits - m
    lse = jnp.log(jnp.sum(jnp.exp(shifted), axis=-1, keepdims=True))  # EUP exp/log
    o_ref[...] = (shifted - lse).astype(o_ref.dtype)


def prepare_decoder_params(weight, bias, compute_dtype=jnp.bfloat16):
    """One-time weight prep (hoist out of the per-step path): transpose to (F, C),
    cast to the MXU compute dtype, pad the class dim to a multiple of 128
    (zero weight columns; -1e30 bias so padded classes never win the max and
    their exp underflows to 0 — keeps the normalizer exact, no NaN)."""
    C, F = weight.shape
    C_pad = _round_up(C, 128)
    w2d = weight.T.astype(compute_dtype)                       # (F, C)
    b2d = bias.astype(jnp.float32).reshape(1, C)
    if C_pad != C:
        w2d = jnp.pad(w2d, ((0, 0), (0, C_pad - C)))
        b2d = jnp.pad(b2d, ((0, 0), (0, C_pad - C)),
                      constant_values=jnp.float32(-1e30))
    return w2d, b2d, C


def conv_asr_decoder_apply(encoder_output, w2d, b2d, num_classes_total,
                           out_dtype=jnp.bfloat16,
                           return_padded_classes=False,
                           small_n_fallback_rows=512):
    """encoder_output: (B, T, F) in its native dtype (f32 or bf16).
    (w2d, b2d, num_classes_total) come from prepare_decoder_params.
    Returns (B, T, C) log-probabilities in out_dtype
    (or (B, T, C_pad) if return_padded_classes=True — padded classes hold
    ~-1e30 log-probs, so argmax / masked losses are unaffected and the extra
    slice/copy is avoided)."""
    B, T, F = encoder_output.shape
    C = num_classes_total
    F_w, C_pad = w2d.shape
    assert F_w == F, f"feature mismatch: encoder F={F}, weight F={F_w}"
    N = B * T
    x2d = encoder_output.reshape(N, F)                # free view, native dtype

    if N < small_n_fallback_rows:
        # Streaming / tiny-batch path: a single-tile pallas_call pays fixed
        # launch + pipeline overhead that plain XLA fusion does not.
        logits = jnp.dot(x2d.astype(w2d.dtype), w2d,
                         preferred_element_type=jnp.float32) + b2d
        out2d = jax.nn.log_softmax(logits, axis=-1).astype(out_dtype)
    else:
        vmem_budget = _vmem_budget_bytes()
        tile_rows = _choose_tile_rows(
            N, F, C_pad,
            x_bytes=jnp.dtype(encoder_output.dtype).itemsize,
            out_bytes=jnp.dtype(out_dtype).itemsize,
            w_bytes=jnp.dtype(w2d.dtype).itemsize,
            budget_bytes=vmem_budget)
        num_tiles = pl.cdiv(N, tile_rows)             # ragged last block, no row pad

        def build(single_buffer_params):
            pm = (dict(pipeline_mode=pl.Buffered(buffer_count=1))
                  if single_buffer_params else {})
            return pl.pallas_call(
                _decoder_kernel,
                out_shape=jax.ShapeDtypeStruct((N, C_pad), out_dtype),
                grid=(num_tiles,),
                in_specs=[
                    pl.BlockSpec((tile_rows, F), lambda i: (i, 0)),     # x row tile
                    pl.BlockSpec((F, C_pad), lambda i: (0, 0), **pm),   # resident weight
                    pl.BlockSpec((1, C_pad), lambda i: (0, 0), **pm),   # resident bias
                ],
                out_specs=pl.BlockSpec((tile_rows, C_pad), lambda i: (i, 0)),
                compiler_params=pltpu.CompilerParams(
                    # Row tiles are fully independent -> megacore sharding.
                    dimension_semantics=("parallel",),
                    vmem_limit_bytes=int(vmem_budget),
                ),
            )

        try:
            out2d = build(True)(x2d, w2d, b2d)
        except Exception:
            # Pallas build without single-buffer pipeline_mode support.
            out2d = build(False)(x2d, w2d, b2d)

    if return_padded_classes:
        return out2d.reshape(B, T, C_pad)
    return out2d[:, :C].reshape(B, T, C)


def conv_asr_decoder(encoder_output, weight, bias, **kwargs):
    """One-shot convenience wrapper.  For steady-state decoding, call
    prepare_decoder_params once at init and use conv_asr_decoder_apply."""
    w2d, b2d, C = prepare_decoder_params(weight, bias)
    return conv_asr_decoder_apply(encoder_output, w2d, b2d, C, **kwargs)


def init_params(key, feat_in, num_classes, add_blank=True):
    """Deterministic synthetic init mirroring Conv1d(feat_in, C, k=1) with
    xavier_uniform weight init (kernel dim of size 1 squeezed)."""
    C = num_classes + 1 if add_blank else num_classes
    kw, kb = jax.random.split(key)
    limit = (6.0 / (feat_in + C)) ** 0.5                  # xavier_uniform, kernel=1
    weight = jax.random.uniform(kw, (C, feat_in), jnp.float32, -limit, limit)
    blim = 1.0 / (feat_in ** 0.5)                         # PyTorch Conv1d bias default
    bias = jax.random.uniform(kb, (C,), jnp.float32, -blim, blim)
    return weight, bias


if __name__ == "__main__":
    key = jax.random.PRNGKey(0)
    k_x, k_p = jax.random.split(key)

    B, T, feat_in, num_classes = 2, 8, 32, 4   # C = num_classes + 1 = 5 (blank added)
    x = jax.random.normal(k_x, (B, T, feat_in), jnp.float32)
    weight, bias = init_params(k_p, feat_in, num_classes, add_blank=True)

    # One-time param prep (hoisted out of the per-step path).
    w2d, b2d, C = prepare_decoder_params(weight, bias)

    # small_n_fallback_rows=0 so this tiny demo shape still exercises the Pallas
    # kernel (production default falls back to plain XLA below 512 rows).
    out = conv_asr_decoder_apply(x, w2d, b2d, C, small_n_fallback_rows=0)
    out = jax.block_until_ready(out)

    assert out.shape == (B, T, C), out.shape
    out_f32 = out.astype(jnp.float32)

    # sanity 1: rows exponentiate-sum to ~1 (bf16 output -> loose tolerance)
    row_sums = jnp.sum(jnp.exp(out_f32), axis=-1)
    assert bool(jnp.allclose(row_sums, 1.0, atol=2e-2)), row_sums

    # sanity 2: matches a pure-JAX f32 reference (bf16 matmul/output -> loose tol)
    ref = jax.nn.log_softmax(
        jnp.einsum("btf,cf->btc", x, weight) + bias[None, None, :], axis=-1)
    assert bool(jnp.allclose(out_f32, ref, atol=5e-2)), float(jnp.max(jnp.abs(out_f32 - ref)))

    print("KERNEL_OK")
</pallas_src>

<mosaic_0001>
module attributes {stable_mosaic.version = 11 : i64} {
  func.func @_decoder_kernel(%arg0: i32, %arg1: memref<16x32xf32, #tpu.memory_space<vmem>>, %arg2: memref<32x128xbf16, #tpu.memory_space<vmem>>, %arg3: memref<1x128xf32, #tpu.memory_space<vmem>>, %arg4: memref<16x128xbf16, #tpu.memory_space<vmem>>) attributes {dimension_semantics = [#tpu.dimension_semantics<parallel>], iteration_bounds = array<i64: 1>, scalar_prefetch = 0 : i64, scratch_operands = 0 : i64, tpu.core_type = #tpu.core_type<tc>, window_params = [{transform_indices = @transform_0, window_bounds = array<i64: 16, 32>}, {pipeline_mode = #tpu.pipeline_mode<synchronous>, transform_indices = @transform_1, window_bounds = array<i64: 32, 128>}, {pipeline_mode = #tpu.pipeline_mode<synchronous>, transform_indices = @transform_2, window_bounds = array<i64: 1, 128>}, {transform_indices = @transform_3, window_bounds = array<i64: 16, 128>}]} {
    %c0 = arith.constant 0 : index
    %c0_0 = arith.constant 0 : index
    %0 = vector.load %arg1[%c0, %c0_0] : memref<16x32xf32, #tpu.memory_space<vmem>>, vector<16x32xf32>
    %1 = arith.truncf %0 : vector<16x32xf32> to vector<16x32xbf16>
    %c0_1 = arith.constant 0 : index
    %c0_2 = arith.constant 0 : index
    %2 = vector.load %arg2[%c0_1, %c0_2] : memref<32x128xbf16, #tpu.memory_space<vmem>>, vector<32x128xbf16>
    %cst = arith.constant dense<0.000000e+00> : vector<16x128xf32>
    %3 = tpu.matmul %1, %2, %cst {dimension_numbers = #tpu.dot_dimension_numbers<[1], [0], [0], [1], [0, 0, 1, 1], [], []>} : vector<16x32xbf16>, vector<32x128xbf16>, vector<16x128xf32> -> vector<16x128xf32>
    %c0_3 = arith.constant 0 : index
    %c0_4 = arith.constant 0 : index
    %4 = vector.load %arg3[%c0_3, %c0_4] : memref<1x128xf32, #tpu.memory_space<vmem>>, vector<1x128xf32>
    %5 = vector.broadcast %4 : vector<1x128xf32> to vector<16x128xf32>
    %6 = arith.addf %3, %5 : vector<16x128xf32>
    %cst_5 = arith.constant dense<0xFF800000> : vector<16xf32>
    %7 = vector.multi_reduction <maximumf>, %6, %cst_5 [1] : vector<16x128xf32> to vector<16xf32>
    %8 = vector.shape_cast %7 : vector<16xf32> to vector<16x1xf32>
    %9 = vector.broadcast %8 : vector<16x1xf32> to vector<16x128xf32>
    %10 = arith.subf %6, %9 : vector<16x128xf32>
    %11 = math.exp %10 : vector<16x128xf32>
    %cst_6 = arith.constant dense<0.000000e+00> : vector<16xf32>
    %12 = vector.multi_reduction <add>, %11, %cst_6 [1] : vector<16x128xf32> to vector<16xf32>
    %13 = vector.shape_cast %12 : vector<16xf32> to vector<16x1xf32>
    %14 = math.log %13 : vector<16x1xf32>
    %15 = vector.broadcast %14 : vector<16x1xf32> to vector<16x128xf32>
    %16 = arith.subf %10, %15 : vector<16x128xf32>
    %17 = arith.truncf %16 : vector<16x128xf32> to vector<16x128xbf16>
    %c0_7 = arith.constant 0 : index
    %c0_8 = arith.constant 0 : index
    %18 = vector.load %arg4[%c0_7, %c0_8] : memref<16x128xbf16, #tpu.memory_space<vmem>>, vector<16x128xbf16>
    tpu.vector_store %arg4[%c0_7, %c0_8], %17 {strides = array<i32>} : memref<16x128xbf16, #tpu.memory_space<vmem>>, vector<16x128xbf16>,
    return
  }
  func.func @transform_0(%arg0: i32) -> (i32, i32) {
    %c0_i32 = arith.constant 0 : i32
    %c0_i32_0 = arith.constant 0 : i32
    return %arg0, %c0_i32 : i32, i32
  }
  func.func @transform_1(%arg0: i32) -> (i32, i32) {
    %c0_i32 = arith.constant 0 : i32
    %c0_i32_0 = arith.constant 0 : i32
    %c0_i32_1 = arith.constant 0 : i32
    return %c0_i32, %c0_i32_0 : i32, i32
  }
  func.func @transform_2(%arg0: i32) -> (i32, i32) {
    %c0_i32 = arith.constant 0 : i32
    %c0_i32_0 = arith.constant 0 : i32
    %c0_i32_1 = arith.constant 0 : i32
    return %c0_i32, %c0_i32_0 : i32, i32
  }
  func.func @transform_3(%arg0: i32) -> (i32, i32) {
    %c0_i32 = arith.constant 0 : i32
    %c0_i32_0 = arith.constant 0 : i32
    return %arg0, %c0_i32 : i32, i32
  }
}

module attributes {stable_mosaic.version = 11 : i64} {
  func.func @_decoder_kernel(%arg0: i32, %arg1: memref<16x32xf32, #tpu.memory_space<vmem>>, %arg2: memref<32x128xbf16, #tpu.memory_space<vmem>>, %arg3: memref<1x128xf32, #tpu.memory_space<vmem>>, %arg4: memref<16x128xbf16, #tpu.memory_space<vmem>>) attributes {dimension_semantics = [#tpu.dimension_semantics<parallel>], iteration_bounds = array<i64: 1>, scalar_prefetch = 0 : i64, scratch_operands = 0 : i64, tpu.core_type = #tpu.core_type<tc>, window_params = [{transform_indices = @transform_0, window_bounds = array<i64: 16, 32>}, {pipeline_mode = #tpu.pipeline_mode<synchronous>, transform_indices = @transform_1, window_bounds = array<i64: 32, 128>}, {pipeline_mode = #tpu.pipeline_mode<synchronous>, transform_indices = @transform_2, window_bounds = array<i64: 1, 128>}, {transform_indices = @transform_3, window_bounds = array<i64: 16, 128>}]} {
    %c0 = arith.constant 0 : index
    %c0_0 = arith.constant 0 : index
    %0 = vector.load %arg1[%c0, %c0_0] : memref<16x32xf32, #tpu.memory_space<vmem>>, vector<16x32xf32>
    %1 = arith.truncf %0 : vector<16x32xf32> to vector<16x32xbf16>
    %c0_1 = arith.constant 0 : index
    %c0_2 = arith.constant 0 : index
    %2 = vector.load %arg2[%c0_1, %c0_2] : memref<32x128xbf16, #tpu.memory_space<vmem>>, vector<32x128xbf16>
    %cst = arith.constant dense<0.000000e+00> : vector<16x128xf32>
    %3 = tpu.matmul %1, %2, %cst {dimension_numbers = #tpu.dot_dimension_numbers<[1], [0], [0], [1], [0, 0, 1, 1], [], []>} : vector<16x32xbf16>, vector<32x128xbf16>, vector<16x128xf32> -> vector<16x128xf32>
    %c0_3 = arith.constant 0 : index
    %c0_4 = arith.constant 0 : index
    %4 = vector.load %arg3[%c0_3, %c0_4] : memref<1x128xf32, #tpu.memory_space<vmem>>, vector<1x128xf32>
    %5 = vector.broadcast %4 : vector<1x128xf32> to vector<16x128xf32>
    %6 = arith.addf %3, %5 : vector<16x128xf32>
    %cst_5 = arith.constant dense<0xFF800000> : vector<16xf32>
    %7 = vector.multi_reduction <maximumf>, %6, %cst_5 [1] : vector<16x128xf32> to vector<16xf32>
    %8 = vector.shape_cast %7 : vector<16xf32> to vector<16x1xf32>
    %9 = vector.broadcast %8 : vector<16x1xf32> to vector<16x128xf32>
    %10 = arith.subf %6, %9 : vector<16x128xf32>
    %11 = math.exp %10 : vector<16x128xf32>
    %cst_6 = arith.constant dense<0.000000e+00> : vector<16xf32>
    %12 = vector.multi_reduction <add>, %11, %cst_6 [1] : vector<16x128xf32> to vector<16xf32>
    %13 = vector.shape_cast %12 : vector<16xf32> to vector<16x1xf32>
    %14 = math.log %13 : vector<16x1xf32>
    %15 = vector.broadcast %14 : vector<16x1xf32> to vector<16x128xf32>
    %16 = arith.subf %10, %15 : vector<16x128xf32>
    %17 = arith.truncf %16 : vector<16x128xf32> to vector<16x128xbf16>
    %c0_7 = arith.constant 0 : index
    %c0_8 = arith.constant 0 : index
    %18 = vector.load %arg4[%c0_7, %c0_8] : memref<16x128xbf16, #tpu.memory_space<vmem>>, vector<16x128xbf16>
    tpu.vector_store %arg4[%c0_7, %c0_8], %17 {strides = array<i32>} : memref<16x128xbf16, #tpu.memory_space<vmem>>, vector<16x128xbf16>,
    return
  }
  func.func @transform_0(%arg0: i32) -> (i32, i32) {
    %c0_i32 = arith.constant 0 : i32
    %c0_i32_0 = arith.constant 0 : i32
    return %arg0, %c0_i32 : i32, i32
  }
  func.func @transform_1(%arg0: i32) -> (i32, i32) {
    %c0_i32 = arith.constant 0 : i32
    %c0_i32_0 = arith.constant 0 : i32
    %c0_i32_1 = arith.constant 0 : i32
    return %c0_i32, %c0_i32_0 : i32, i32
  }
  func.func @transform_2(%arg0: i32) -> (i32, i32) {
    %c0_i32 = arith.constant 0 : i32
    %c0_i32_0 = arith.constant 0 : i32
    %c0_i32_1 = arith.constant 0 : i32
    return %c0_i32, %c0_i32_0 : i32, i32
  }
  func.func @transform_3(%arg0: i32) -> (i32, i32) {
    %c0_i32 = arith.constant 0 : i32
    %c0_i32_0 = arith.constant 0 : i32
    return %arg0, %c0_i32 : i32, i32
  }
}

</mosaic_0001>

<llo_original>
// kernel: tpu_custom_call.1
$region0: #{tpu_custom_call.1}
  #allocation0 [shape = 'u32[]', space=smem, size = 0x4, offset = 0x4, fixed_abs, tag = 'smem constant byte address 0x4 - core index']
  #allocation1 [shape = 'u32[72,128]{1,0:T(1,128)}', space=vmem, size = 0x9000, scoped, tag = 'internal scratch']
  %s0 = inlined_call_operand.hbm [shape: f32[16,32], index: 0, kind: input, shape index: {}]
  %s1 = inlined_call_operand.hbm [shape: bf16[32,128], index: 1, kind: input, shape index: {}]
  %s2 = inlined_call_operand.vmem [shape: f32[1,128], index: 2, kind: input, shape index: {}]
  %s3 = inlined_call_operand.hbm [shape: bf16[16,128], index: 3, kind: output, shape index: {}]
  %s4 = sld [smem:[#allocation0]]
  $region30: #{tpu_custom_call.1} parent=0
    _
  %s6 = ssub.s32 1, %s4
  %s7 = scalar_select 0, %s6, %s4
  $region1: #{tpu_custom_call.1} parent=0
    #allocation2 [shape = 'u8[8192]{0}', space=vmem, size = 0x2000, scoped, tag = 'input window, operand 0, single buffered']
    #allocation3 [shape = 's32[1]{0}', space=sflag, size = 0x4, scoped, tag = 'scoped memory for tpu_custom_call.1']
    #allocation4 [shape = 's32[1]{0}', space=sflag, size = 0x4, scoped, tag = 'scoped memory for tpu_custom_call.1']
    #allocation5 [shape = 'u8[8192]{0}', space=vmem, size = 0x2000, scoped, tag = 'input window, operand 1, single buffered']
    #allocation6 [shape = 's32[1]{0}', space=sflag, size = 0x4, scoped, tag = 'scoped memory for tpu_custom_call.1']
    #allocation7 [shape = 'u8[4096]{0}', space=vmem, size = 0x1000, scoped, tag = 'output window, operand 0, single buffered']
    %8 = vsyncpa [#allocation3], 0
    %9 = vsyncpa [#allocation6], 0
    %10 = vsyncpa [#allocation4], 0
    // Predicated region
    $region2: #{tpu_custom_call.1} parent=1 // pred_check
      _
    $region3: #{tpu_custom_call.1} parent=1 // pred_check_branch
      %12 = sbr.rel (0) target = $region5
    $region4: #{tpu_custom_call.1} parent=1 // pred_region
      %14 = vsyncadd [#allocation3], 0
      %s15 = sshll.u32 %s0, 4
      %s16 = int_to_ptr.hbm [resolvable:$true] %s15
      %s17 = sshll.u32 [#allocation2], 4
      %s18 = int_to_ptr.vmem [resolvable:$true] %s17
      %23 = dma.hbm_to_vmem [thread:$0]  %s16, 256, %s18, [#allocation3], 128, 128, 8
    $region5: #{tpu_custom_call.1} parent=1 // pred_fallthru
      _
    // Predicated region
    $region6: #{tpu_custom_call.1} parent=1 // pred_check
      _
    $region7: #{tpu_custom_call.1} parent=1 // pred_check_branch
      %25 = sbr.rel (0) target = $region9
    $region8: #{tpu_custom_call.1} parent=1 // pred_region
      %27 = vsyncadd [#allocation6], 0
      %s28 = sshll.u32 %s1, 4
      %s29 = int_to_ptr.hbm [resolvable:$true] %s28
      %s30 = sshll.u32 [#allocation5], 4
      %s31 = int_to_ptr.vmem [resolvable:$true] %s30
      %36 = dma.hbm_to_vmem [thread:$0]  %s29, 256, %s31, [#allocation6], 64, 64, 4
    $region9: #{tpu_custom_call.1} parent=1 // pred_fallthru
      _
    // Predicated region
    $region10: #{tpu_custom_call.1} parent=1 // pred_check
      _
    $region11: #{tpu_custom_call.1} parent=1 // pred_check_branch
      %38 = sbr.rel (0) target = $region13
    $region12: #{tpu_custom_call.1} parent=1 // pred_region
      _
    $region13: #{tpu_custom_call.1} parent=1 // pred_fallthru
      _
    // Predicated region
    $region14: #{tpu_custom_call.1} parent=1 // pred_check
      _
    $region15: #{tpu_custom_call.1} parent=1 // pred_check_branch
      %40 = sbr.rel (0) target = $region17
    $region16: #{tpu_custom_call.1} parent=1 // pred_region
      %42 = dma.done [#allocation3], 256
    $region17: #{tpu_custom_call.1} parent=1 // pred_fallthru
      _
    // Predicated region
    $region18: #{tpu_custom_call.1} parent=1 // pred_check
      _
    $region19: #{tpu_custom_call.1} parent=1 // pred_check_branch
      %44 = sbr.rel (0) target = $region21
    $region20: #{tpu_custom_call.1} parent=1 // pred_region
      %46 = dma.done [#allocation6], 256
    $region21: #{tpu_custom_call.1} parent=1 // pred_fallthru
      _
    %v48 = vld [vmem:[#allocation2] sm:$0xff]
    %v49 = vld [vmem:[#allocation2 + $0x8] sm:$0xff]
    %v50 = vpack.c.bf16 %v49, %v48
    %v51 = vld [vmem:[#allocation5] sm:$0xf]
    %v52 = vld [vmem:[#allocation5 + $0x4] sm:$0xf]
    %v53 = vld [vmem:[#allocation5 + $0x8] sm:$0xf]
    %v54 = vld [vmem:[#allocation5 + $0xc] sm:$0xf]
    %v55 = vld [vmem:[%s2] sm:$0x1]
    %v57 = vperm.slane %v55, 0
    %v63 = vunpack.c.l.b16 %v51
    %v64 = vunpack.c.l.b16 %v52
    %v65 = vunpack.c.l.b16 %v53
    %v66 = vunpack.c.l.b16 %v54
    %v67 = vpack.c.b16 %v64, %v63
    %v68 = vpack.c.b16 %v66, %v65
    %vm71 = vcmask 261120
    %v73 = vsel %vm71, %v50, 0
    %75 = vmatpush.bf16.msra.mxu0 0
    %76 = vmatpush.bf16.msra.mxu0 0
    %77 = vmatpush.bf16.msra.mxu0 0
    %78 = vmatpush.bf16.msra.mxu0 0
    %79 = vmatpush.bf16.msra.mxu0 0
    %80 = vmatpush.bf16.msra.mxu0 0
    %81 = vmatpush.bf16.msra.mxu0 %v68
    %82 = vmatpush.bf16.msra.mxu0 %v67
    %83 = vmatmul.bf16.gmra.mxu0 %v73
    %v84 = vpop.f32.mrf.mxu0
    %v85 = vadd.f32 %v57, %v84
    %v86 = vpop.f32.mrf.mxu0
    %v87 = vadd.f32 %v57, %v86
    %88 = vdwg.mxu0
    %89 = vmax.xlane.f32.xlu0 %v85
    %v90 = vpop.xlane.xlu0 %89
    %91 = vmax.xlane.f32.xlu0 %v87
    %v92 = vpop.xlane.xlu0 %91
    %v93 = vsub.f32 %v85, %v90
    %v94 = vsub.f32 %v87, %v92
    %v95 = vmul.f32 %v93, 1.442695
    %v96 = vpow.pop %v95
    %v97 = vmul.f32 %v94, 1.442695
    %v98 = vpow.pop %v97
    %99 = vadd.xlane.f32.xlu0 %v96
    %v100 = vpop.xlane.xlu0 %99
    %101 = vadd.xlane.f32.xlu0 %v98
    %v102 = vpop.xlane.xlu0 %101
    %v103 = vlog2.pop %v100
    %v104 = vmul.f32 %v103, 0.6931472
    %v105 = vlog2.pop %v102
    %v106 = vmul.f32 %v105, 0.6931472
    %v107 = vsub.f32 %v93, %v104
    %v108 = vsub.f32 %v94, %v106
    %v109 = vpack.c.bf16 %v107, %v107
    %v110 = vpack.c.bf16 %v108, %v108
    %111 = vst [vmem:[#allocation7] sm:$0xf] %v109
    %112 = vst [vmem:[#allocation7 + $0x4] sm:$0xf] %v110
    // Predicated region
    $region22: #{tpu_custom_call.1} parent=1 // pred_check
      _
    $region23: #{tpu_custom_call.1} parent=1 // pred_check_branch
      %114 = sbr.rel (0) target = $region25
    $region24: #{tpu_custom_call.1} parent=1 // pred_region
      %116 = vsyncadd [#allocation4], 0
      %s117 = sshll.u32 [#allocation7], 4
      %s118 = int_to_ptr.vmem [resolvable:$true] %s117
      %s119 = sshll.u32 %s3, 4
      %s120 = int_to_ptr.hbm [resolvable:$true] %s119
      %125 = dma.vmem_to_hbm [thread:$0]  %s118, 128, %s120, [#allocation4], 64, 64, 4
    $region25: #{tpu_custom_call.1} parent=1 // pred_fallthru
      _
    // Predicated region
    $region26: #{tpu_custom_call.1} parent=1 // pred_check
      _
    $region27: #{tpu_custom_call.1} parent=1 // pred_check_branch
      %127 = sbr.rel (0) target = $region29
    $region28: #{tpu_custom_call.1} parent=1 // pred_region
      %129 = dma.done [#allocation4], 128
    $region29: #{tpu_custom_call.1} parent=1 // pred_fallthru
      _
    %130 = vsyncpa [#allocation3], 1
    %131 = vsyncpa [#allocation6], 1
    %132 = vsyncpa [#allocation4], 1

// kernel: tpu_custom_call.1
$region0: #{tpu_custom_call.1}
  #allocation0 [shape = 'u32[]', space=smem, size = 0x4, offset = 0x4, fixed_abs, tag = 'smem constant byte address 0x4 - core index']
  #allocation1 [shape = 'u32[72,128]{1,0:T(1,128)}', space=vmem, size = 0x9000, scoped, tag = 'internal scratch']
  %s0 = inlined_call_operand.hbm [shape: f32[16,32], index: 0, kind: input, shape index: {}]
  %s1 = inlined_call_operand.hbm [shape: bf16[32,128], index: 1, kind: input, shape index: {}]
  %s2 = inlined_call_operand.vmem [shape: f32[1,128], index: 2, kind: input, shape index: {}]
  %s3 = inlined_call_operand.hbm [shape: bf16[16,128], index: 3, kind: output, shape index: {}]
  %s4 = sld [smem:[#allocation0]]
  $region30: #{tpu_custom_call.1} parent=0
    _
  %s6 = ssub.s32 1, %s4
  %s7 = scalar_select 0, %s6, %s4
  $region1: #{tpu_custom_call.1} parent=0
    #allocation2 [shape = 'u8[8192]{0}', space=vmem, size = 0x2000, scoped, tag = 'input window, operand 0, single buffered']
    #allocation3 [shape = 's32[1]{0}', space=sflag, size = 0x4, scoped, tag = 'scoped memory for tpu_custom_call.1']
    #allocation4 [shape = 's32[1]{0}', space=sflag, size = 0x4, scoped, tag = 'scoped memory for tpu_custom_call.1']
    #allocation5 [shape = 'u8[8192]{0}', space=vmem, size = 0x2000, scoped, tag = 'input window, operand 1, single buffered']
    #allocation6 [shape = 's32[1]{0}', space=sflag, size = 0x4, scoped, tag = 'scoped memory for tpu_custom_call.1']
    #allocation7 [shape = 'u8[4096]{0}', space=vmem, size = 0x1000, scoped, tag = 'output window, operand 0, single buffered']
    %8 = vsyncpa [#allocation3], 0
    %9 = vsyncpa [#allocation6], 0
    %10 = vsyncpa [#allocation4], 0
    // Predicated region
    $region2: #{tpu_custom_call.1} parent=1 // pred_check
      _
    $region3: #{tpu_custom_call.1} parent=1 // pred_check_branch
      %12 = sbr.rel (0) target = $region5
    $region4: #{tpu_custom_call.1} parent=1 // pred_region
      %14 = vsyncadd [#allocation3], 0
      %s15 = sshll.u32 %s0, 4
      %s16 = int_to_ptr.hbm [resolvable:$true] %s15
      %s17 = sshll.u32 [#allocation2], 4
      %s18 = int_to_ptr.vmem [resolvable:$true] %s17
      %23 = dma.hbm_to_vmem [thread:$0]  %s16, 256, %s18, [#allocation3], 128, 128, 8
    $region5: #{tpu_custom_call.1} parent=1 // pred_fallthru
      _
    // Predicated region
    $region6: #{tpu_custom_call.1} parent=1 // pred_check
      _
    $region7: #{tpu_custom_call.1} parent=1 // pred_check_branch
      %25 = sbr.rel (0) target = $region9
    $region8: #{tpu_custom_call.1} parent=1 // pred_region
      %27 = vsyncadd [#allocation6], 0
      %s28 = sshll.u32 %s1, 4
      %s29 = int_to_ptr.hbm [resolvable:$true] %s28
      %s30 = sshll.u32 [#allocation5], 4
      %s31 = int_to_ptr.vmem [resolvable:$true] %s30
      %36 = dma.hbm_to_vmem [thread:$0]  %s29, 256, %s31, [#allocation6], 64, 64, 4
    $region9: #{tpu_custom_call.1} parent=1 // pred_fallthru
      _
    // Predicated region
    $region10: #{tpu_custom_call.1} parent=1 // pred_check
      _
    $region11: #{tpu_custom_call.1} parent=1 // pred_check_branch
      %38 = sbr.rel (0) target = $region13
    $region12: #{tpu_custom_call.1} parent=1 // pred_region
      _
    $region13: #{tpu_custom_call.1} parent=1 // pred_fallthru
      _
    // Predicated region
    $region14: #{tpu_custom_call.1} parent=1 // pred_check
      _
    $region15: #{tpu_custom_call.1} parent=1 // pred_check_branch
      %40 = sbr.rel (0) target = $region17
    $region16: #{tpu_custom_call.1} parent=1 // pred_region
      %42 = dma.done [#allocation3], 256
    $region17: #{tpu_custom_call.1} parent=1 // pred_fallthru
      _
    // Predicated region
    $region18: #{tpu_custom_call.1} parent=1 // pred_check
      _
    $region19: #{tpu_custom_call.1} parent=1 // pred_check_branch
      %44 = sbr.rel (0) target = $region21
    $region20: #{tpu_custom_call.1} parent=1 // pred_region
      %46 = dma.done [#allocation6], 256
    $region21: #{tpu_custom_call.1} parent=1 // pred_fallthru
      _
    %v48 = vld [vmem:[#allocation2] sm:$0xff]
    %v49 = vld [vmem:[#allocation2 + $0x8] sm:$0xff]
    %v50 = vpack.c.bf16 %v49, %v48
    %v51 = vld [vmem:[#allocation5] sm:$0xf]
    %v52 = vld [vmem:[#allocation5 + $0x4] sm:$0xf]
    %v53 = vld [vmem:[#allocation5 + $0x8] sm:$0xf]
    %v54 = vld [vmem:[#allocation5 + $0xc] sm:$0xf]
    %v55 = vld [vmem:[%s2] sm:$0x1]
    %v57 = vperm.slane %v55, 0
    %v63 = vunpack.c.l.b16 %v51
    %v64 = vunpack.c.l.b16 %v52
    %v65 = vunpack.c.l.b16 %v53
    %v66 = vunpack.c.l.b16 %v54
    %v67 = vpack.c.b16 %v64, %v63
    %v68 = vpack.c.b16 %v66, %v65
    %vm71 = vcmask 261120
    %v73 = vsel %vm71, %v50, 0
    %75 = vmatpush.bf16.msra.mxu0 0
    %76 = vmatpush.bf16.msra.mxu0 0
    %77 = vmatpush.bf16.msra.mxu0 0
    %78 = vmatpush.bf16.msra.mxu0 0
    %79 = vmatpush.bf16.msra.mxu0 0
    %80 = vmatpush.bf16.msra.mxu0 0
    %81 = vmatpush.bf16.msra.mxu0 %v68
    %82 = vmatpush.bf16.msra.mxu0 %v67
    %83 = vmatmul.bf16.gmra.mxu0 %v73
    %v84 = vpop.f32.mrf.mxu0
    %v85 = vadd.f32 %v57, %v84
    %v86 = vpop.f32.mrf.mxu0
    %v87 = vadd.f32 %v57, %v86
    %88 = vdwg.mxu0
    %89 = vmax.xlane.f32.xlu0 %v85
    %v90 = vpop.xlane.xlu0 %89
    %91 = vmax.xlane.f32.xlu0 %v87
    %v92 = vpop.xlane.xlu0 %91
    %v93 = vsub.f32 %v85, %v90
    %v94 = vsub.f32 %v87, %v92
    %v95 = vmul.f32 %v93, 1.442695
    %v96 = vpow.pop %v95
    %v97 = vmul.f32 %v94, 1.442695
    %v98 = vpow.pop %v97
    %99 = vadd.xlane.f32.xlu0 %v96
    %v100 = vpop.xlane.xlu0 %99
    %101 = vadd.xlane.f32.xlu0 %v98
    %v102 = vpop.xlane.xlu0 %101
    %v103 = vlog2.pop %v100
    %v104 = vmul.f32 %v103, 0.6931472
    %v105 = vlog2.pop %v102
    %v106 = vmul.f32 %v105, 0.6931472
    %v107 = vsub.f32 %v93, %v104
    %v108 = vsub.f32 %v94, %v106
    %v109 = vpack.c.bf16 %v107, %v107
    %v110 = vpack.c.bf16 %v108, %v108
    %111 = vst [vmem:[#allocation7] sm:$0xf] %v109
    %112 = vst [vmem:[#allocation7 + $0x4] sm:$0xf] %v110
    // Predicated region
    $region22: #{tpu_custom_call.1} parent=1 // pred_check
      _
    $region23: #{tpu_custom_call.1} parent=1 // pred_check_branch
      %114 = sbr.rel (0) target = $region25
    $region24: #{tpu_custom_call.1} parent=1 // pred_region
      %116 = vsyncadd [#allocation4], 0
      %s117 = sshll.u32 [#allocation7], 4
      %s118 = int_to_ptr.vmem [resolvable:$true] %s117
      %s119 = sshll.u32 %s3, 4
      %s120 = int_to_ptr.hbm [resolvable:$true] %s119
      %125 = dma.vmem_to_hbm [thread:$0]  %s118, 128, %s120, [#allocation4], 64, 64, 4
    $region25: #{tpu_custom_call.1} parent=1 // pred_fallthru
      _
    // Predicated region
    $region26: #{tpu_custom_call.1} parent=1 // pred_check
      _
    $region27: #{tpu_custom_call.1} parent=1 // pred_check_branch
      %127 = sbr.rel (0) target = $region29
    $region28: #{tpu_custom_call.1} parent=1 // pred_region
      %129 = dma.done [#allocation4], 128
    $region29: #{tpu_custom_call.1} parent=1 // pred_fallthru
      _
    %130 = vsyncpa [#allocation3], 1
    %131 = vsyncpa [#allocation6], 1
    %132 = vsyncpa [#allocation4], 1

</llo_original>
